<compile_context>
chip_gen: v7x
topology: tpu7x:2x2x1
jax: 0.10.0
libtpu: 0.0.40
codegen_flags: <defaults>
</compile_context>

<pallas_src>
import functools

import jax
import jax.numpy as jnp
from jax.experimental import pallas as pl
from jax.experimental.pallas import tpu as pltpu

BN_EPS = 1e-5


# ---------------------------------------------------------------------------
# Kernel: one grid step == one patch network, whole batch, (features, B) layout
# All parameters are VMEM-resident; patch selected via pl.program_id(0).
# ---------------------------------------------------------------------------
def _mlp_kernel(x_ref, w0_ref, wh_ref, pk_ref, out_ref, *, layers):
    L = layers
    p = pl.program_id(0)
    inv_b = 1.0 / x_ref.shape[-1]          # static batch size (B not tiled)

    # Packed parameter slab pk_ref: (P, N, 3L+2)
    #   col 0        : b0
    #   cols 1..L-1  : bh[i]         (hidden biases)
    #   cols L..2L-1 : gamma[j]
    #   cols 2L..3L-1: beta[j]
    #   col 3L       : wo            (final linear weight, as a column)
    #   col 3L+1     : bo            (final bias, replicated over rows)
    def col(c):
        return pk_ref[p, :, c:c + 1]                                 # (N, 1)

    def bn(t, j):
        # Training-mode BatchNorm1d over the batch (lane) axis.
        # Single fused pass for stats; affine fused into scale/shift.
        mu = jnp.sum(t, axis=-1, keepdims=True) * inv_b              # (N, 1)
        ex2 = jnp.sum(t * t, axis=-1, keepdims=True) * inv_b         # (N, 1)
        var = ex2 - mu * mu
        scale = jax.lax.rsqrt(var + BN_EPS) * col(L + j)             # gamma
        shift = col(2 * L + j) - mu * scale                          # beta
        return t * scale + shift

    x = x_ref[...]                                                   # (D1, B)

    # idx == 0 block:  y = BN_0(tanh(W0 x + b0))
    tmp = jnp.tanh(
        jnp.dot(w0_ref[p], x, preferred_element_type=jnp.float32) + col(0))
    y = bn(tmp, 0)                                                   # (N, B)

    # idx >= 1 residual blocks (static unroll; `layers` is small).
    for i in range(L - 1):
        tmp = jnp.tanh(
            jnp.dot(wh_ref[p, i], y, preferred_element_type=jnp.float32)
            + col(1 + i))
        y = bn(tmp, i + 1) + y

    # Final Linear(N -> 1): VPU multiply + sublane reduce, lane-dense output.
    wo = col(3 * L)                                                  # (N, 1)
    bo = pk_ref[p, 0:1, 3 * L + 1:3 * L + 2]                         # (1, 1)
    out_ref[0] = jnp.sum(y * wo, axis=0, keepdims=True) + bo


# ---------------------------------------------------------------------------
# Wrapper
# ---------------------------------------------------------------------------
def _pack_small_params(params, layers):
    """Pack b0, bh, gamma, beta, wo, bo into one (P, N, 3L+2) slab."""
    L = layers
    P, N, _ = params["w0"].shape
    cols = [params["b0"]]                                            # (P, N, 1)
    cols += [params["bh"][:, i] for i in range(L - 1)]
    cols += [params["gamma"][:, j] for j in range(L)]
    cols += [params["beta"][:, j] for j in range(L)]
    cols += [params["wo"]]
    cols += [jnp.broadcast_to(params["bo"], (P, N, 1))]
    return jnp.concatenate(cols, axis=-1)                            # (P, N, 3L+2)


def _run_patches(x, params, *, layers):
    """Evaluate all patch networks on x. Returns (P, B)."""
    B, d1 = x.shape
    P, N, _ = params["w0"].shape
    L = layers
    assert L >= 2, "kernel assumes at least one residual (hidden) block"
    K = 3 * L + 2
    xT = x.T                                                         # (D1, B)
    packed = _pack_small_params(params, L)

    kernel = functools.partial(_mlp_kernel, layers=L)
    grid_spec = pltpu.PrefetchScalarGridSpec(
        num_scalar_prefetch=0,
        grid=(P,),
        in_specs=[
            # Constant index_maps -> all inputs fully VMEM-resident across the
            # patch grid; no per-step input DMA (only the output writeback).
            pl.BlockSpec((d1, B), lambda p: (0, 0)),
            pl.BlockSpec((P, N, d1), lambda p: (0, 0, 0)),
            pl.BlockSpec((P, L - 1, N, N), lambda p: (0, 0, 0, 0)),
            pl.BlockSpec((P, N, K), lambda p: (0, 0, 0)),
        ],
        out_specs=pl.BlockSpec((1, 1, B), lambda p: (p, 0, 0)),
    )
    out = pl.pallas_call(
        kernel,
        out_shape=jax.ShapeDtypeStruct((P, 1, B), jnp.float32),
        grid_spec=grid_spec,
        compiler_params=pltpu.CompilerParams(
            dimension_semantics=("parallel",),          # TODO(synk): CORE_PARALLEL on v7x
            vmem_limit_bytes=32 * 1024 * 1024),         # headroom when B grows
    )(xT, params["w0"], params["wh"], packed)
    return out[:, 0, :]                                              # (P, B)


def _bisect_left(t_boundaries, val):
    """Patch-interval index for each t (mirrors Net_NPP23.bisect_left)."""
    cond = t_boundaries[None, :] <= (val + 1e-8)[:, None]
    idx = jnp.argmax(cond, axis=1) - 1
    idx = jnp.where(val == t_boundaries[0], 0, idx)
    idx = jnp.where(val == t_boundaries[-1], t_boundaries.shape[0] - 2, idx)
    return idx


def net_npp23_forward(x, params, t_boundaries, *, layers, patch=None):
    """Same result as Net_NPP23.forward(x, patch=patch). x: (B, dim+1)."""
    if patch is not None:
        p = jax.tree_util.tree_map(lambda a: a[patch:patch + 1], params)
        return _run_patches(x, p, layers=layers)[0]                  # (B,)
    yy = _run_patches(x, params, layers=layers)                      # (P, B)
    idx = _bisect_left(t_boundaries, x[:, 0])                        # (B,)
    return jnp.take_along_axis(yy, idx[None, :], axis=0)[0]          # (B,)


# ---------------------------------------------------------------------------
# Parameters (PyTorch-style init) and pure-JAX reference for the check
# ---------------------------------------------------------------------------
def init_params(key, *, dim, neurons, layers, patches):
    d1 = dim + 1
    ks = jax.random.split(key, 6)

    def unif(k, shape, fan_in):
        bound = 1.0 / float(fan_in) ** 0.5
        return jax.random.uniform(k, shape, jnp.float32, -bound, bound)

    return dict(
        w0=unif(ks[0], (patches, neurons, d1), d1),          # (out, in) torch layout
        b0=unif(ks[1], (patches, neurons, 1), d1),
        wh=unif(ks[2], (patches, layers - 1, neurons, neurons), neurons),
        bh=unif(ks[3], (patches, layers - 1, neurons, 1), neurons),
        gamma=jnp.ones((patches, layers, neurons, 1), jnp.float32),
        beta=jnp.zeros((patches, layers, neurons, 1), jnp.float32),
        wo=unif(ks[4], (patches, neurons, 1), neurons),       # stored as column
        bo=unif(ks[5], (patches, 1, 1), neurons),
    )


def _forward_ref_patch(x, p, pp, *, layers):
    def bn(t, g, b):
        mu = t.mean(0, keepdims=True)
        var = ((t - mu) ** 2).mean(0, keepdims=True)
        return (t - mu) * jax.lax.rsqrt(var + BN_EPS) * g + b

    y = bn(jnp.tanh(x @ p["w0"][pp].T + p["b0"][pp, :, 0]),
           p["gamma"][pp, 0, :, 0], p["beta"][pp, 0, :, 0])
    for i in range(layers - 1):
        y = bn(jnp.tanh(y @ p["wh"][pp, i].T + p["bh"][pp, i, :, 0]),
               p["gamma"][pp, i + 1, :, 0], p["beta"][pp, i + 1, :, 0]) + y
    return (y @ p["wo"][pp] + p["bo"][pp, 0]).reshape(-1)


def forward_ref(x, p, t_boundaries, *, layers, patch=None):
    if patch is not None:
        return _forward_ref_patch(x, p, patch, layers=layers)
    P = p["w0"].shape[0]
    yy = jnp.stack([_forward_ref_patch(x, p, pp, layers=layers)
                    for pp in range(P)], axis=-1)                    # (B, P)
    idx = _bisect_left(t_boundaries, x[:, 0])
    return jnp.take_along_axis(yy, idx[:, None], axis=-1)[:, 0]


# ---------------------------------------------------------------------------
if __name__ == "__main__":
    # Small shapes consistent with the module. B=128 keeps the output lane-dense.
    dim, neurons, layers, batch, patches = 4, 32, 3, 128, 2
    t_lo, T = 0.0, 1.0
    delta_t = (T - t_lo) / patches
    # descending boundaries, exactly as in __init__
    t_boundaries = jnp.array(
        ([t_lo + i * delta_t for i in range(patches)] + [T])[::-1], jnp.float32)

    key = jax.random.PRNGKey(0)
    k_t, k_x, k_p = jax.random.split(key, 3)
    params = init_params(k_p, dim=dim, neurons=neurons, layers=layers,
                         patches=patches)
    # column 0 is t in [t_lo, T], columns 1.. are spatial coords in [-10, 10]
    t_col = jax.random.uniform(k_t, (batch, 1), jnp.float32, t_lo, T)
    x_sp = jax.random.uniform(k_x, (batch, dim), jnp.float32, -10.0, 10.0)
    x = jnp.concatenate([t_col, x_sp], axis=-1)

    # patch=None path (all patch networks + bisect_left gather)
    y_kernel = jax.block_until_ready(
        net_npp23_forward(x, params, t_boundaries, layers=layers))
    y_ref = jax.block_until_ready(
        forward_ref(x, params, t_boundaries, layers=layers))
    assert y_kernel.shape == (batch,)
    assert jnp.allclose(y_kernel, y_ref, rtol=1e-4, atol=1e-4), (
        float(jnp.max(jnp.abs(y_kernel - y_ref))))

    # explicit-patch path
    y_p1 = jax.block_until_ready(
        net_npp23_forward(x, params, t_boundaries, layers=layers, patch=1))
    y_p1_ref = forward_ref(x, params, t_boundaries, layers=layers, patch=1)
    assert jnp.allclose(y_p1, y_p1_ref, rtol=1e-4, atol=1e-4), (
        float(jnp.max(jnp.abs(y_p1 - y_p1_ref))))

    print("KERNEL_OK")
</pallas_src>

<mosaic_0001>
module attributes {stable_mosaic.version = 11 : i64} {
  func.func @_mlp_kernel(%arg0: i32, %arg1: memref<5x128xf32, #tpu.memory_space<vmem>>, %arg2: memref<2x32x5xf32, #tpu.memory_space<vmem>>, %arg3: memref<2x2x32x32xf32, #tpu.memory_space<vmem>>, %arg4: memref<2x32x11xf32, #tpu.memory_space<vmem>>, %arg5: memref<1x1x128xf32, #tpu.memory_space<vmem>>) attributes {dimension_semantics = [#tpu.dimension_semantics<parallel>], iteration_bounds = array<i64: 2>, scalar_prefetch = 0 : i64, scratch_operands = 0 : i64, tpu.core_type = #tpu.core_type<tc>, window_params = [{pipeline_mode = #tpu.pipeline_mode<synchronous>, transform_indices = @transform_0, window_bounds = array<i64: 5, 128>}, {pipeline_mode = #tpu.pipeline_mode<synchronous>, transform_indices = @transform_1, window_bounds = array<i64: 2, 32, 5>}, {pipeline_mode = #tpu.pipeline_mode<synchronous>, transform_indices = @transform_2, window_bounds = array<i64: 2, 2, 32, 32>}, {pipeline_mode = #tpu.pipeline_mode<synchronous>, transform_indices = @transform_3, window_bounds = array<i64: 2, 32, 11>}, {transform_indices = @transform_4, window_bounds = array<i64: 1, 1, 128>}]} {
    %c0 = arith.constant 0 : index
    %c0_0 = arith.constant 0 : index
    %0 = vector.load %arg1[%c0, %c0_0] : memref<5x128xf32, #tpu.memory_space<vmem>>, vector<5x128xf32>
    %1 = arith.index_cast %arg0 : i32 to index
    %c0_1 = arith.constant 0 : index
    %c0_2 = arith.constant 0 : index
    %2 = vector.load %arg2[%1, %c0_1, %c0_2] : memref<2x32x5xf32, #tpu.memory_space<vmem>>, vector<1x32x5xf32>
    %3 = vector.shape_cast %2 : vector<1x32x5xf32> to vector<32x5xf32>
    %cst = arith.constant dense<0.000000e+00> : vector<32x128xf32>
    %4 = tpu.matmul %3, %0, %cst {dimension_numbers = #tpu.dot_dimension_numbers<[1], [0], [0], [1], [0, 0, 1, 1], [], []>} : vector<32x5xf32>, vector<5x128xf32>, vector<32x128xf32> -> vector<32x128xf32>
    %5 = arith.index_cast %arg0 : i32 to index
    %c0_3 = arith.constant 0 : index
    %c0_4 = arith.constant 0 : index
    %6 = vector.load %arg4[%5, %c0_3, %c0_4] : memref<2x32x11xf32, #tpu.memory_space<vmem>>, vector<1x32x1xf32>
    %7 = vector.shape_cast %6 : vector<1x32x1xf32> to vector<32x1xf32>
    %8 = vector.broadcast %7 : vector<32x1xf32> to vector<32x128xf32>
    %9 = arith.addf %4, %8 : vector<32x128xf32>
    %10 = math.tanh %9 : vector<32x128xf32>
    %cst_5 = arith.constant dense<0.000000e+00> : vector<32xf32>
    %11 = vector.multi_reduction <add>, %10, %cst_5 [1] : vector<32x128xf32> to vector<32xf32>
    %12 = vector.shape_cast %11 : vector<32xf32> to vector<32x1xf32>
    %cst_6 = arith.constant 7.812500e-03 : f32
    %13 = vector.broadcast %cst_6 : f32 to vector<32x1xf32>
    %14 = arith.mulf %12, %13 : vector<32x1xf32>
    %15 = arith.mulf %10, %10 : vector<32x128xf32>
    %cst_7 = arith.constant dense<0.000000e+00> : vector<32xf32>
    %16 = vector.multi_reduction <add>, %15, %cst_7 [1] : vector<32x128xf32> to vector<32xf32>
    %17 = vector.shape_cast %16 : vector<32xf32> to vector<32x1xf32>
    %cst_8 = arith.constant 7.812500e-03 : f32
    %18 = vector.broadcast %cst_8 : f32 to vector<32x1xf32>
    %19 = arith.mulf %17, %18 : vector<32x1xf32>
    %20 = arith.mulf %14, %14 : vector<32x1xf32>
    %21 = arith.subf %19, %20 : vector<32x1xf32>
    %cst_9 = arith.constant 9.99999974E-6 : f32
    %22 = vector.broadcast %cst_9 : f32 to vector<32x1xf32>
    %23 = arith.addf %21, %22 : vector<32x1xf32>
    %24 = math.rsqrt %23 : vector<32x1xf32>
    %25 = arith.index_cast %arg0 : i32 to index
    %c0_10 = arith.constant 0 : index
    %c3 = arith.constant 3 : index
    %26 = vector.load %arg4[%25, %c0_10, %c3] : memref<2x32x11xf32, #tpu.memory_space<vmem>>, vector<1x32x1xf32>
    %27 = vector.shape_cast %26 : vector<1x32x1xf32> to vector<32x1xf32>
    %28 = arith.mulf %24, %27 : vector<32x1xf32>
    %29 = arith.index_cast %arg0 : i32 to index
    %c0_11 = arith.constant 0 : index
    %c6 = arith.constant 6 : index
    %30 = vector.load %arg4[%29, %c0_11, %c6] : memref<2x32x11xf32, #tpu.memory_space<vmem>>, vector<1x32x1xf32>
    %31 = vector.shape_cast %30 : vector<1x32x1xf32> to vector<32x1xf32>
    %32 = arith.mulf %14, %28 : vector<32x1xf32>
    %33 = arith.subf %31, %32 : vector<32x1xf32>
    %34 = vector.broadcast %28 : vector<32x1xf32> to vector<32x128xf32>
    %35 = arith.mulf %10, %34 : vector<32x128xf32>
    %36 = vector.broadcast %33 : vector<32x1xf32> to vector<32x128xf32>
    %37 = arith.addf %35, %36 : vector<32x128xf32>
    %38 = arith.index_cast %arg0 : i32 to index
    %c0_12 = arith.constant 0 : index
    %c0_13 = arith.constant 0 : index
    %c0_14 = arith.constant 0 : index
    %39 = vector.load %arg3[%38, %c0_12, %c0_13, %c0_14] : memref<2x2x32x32xf32, #tpu.memory_space<vmem>>, vector<1x1x32x32xf32>
    %40 = vector.shape_cast %39 : vector<1x1x32x32xf32> to vector<32x32xf32>
    %cst_15 = arith.constant dense<0.000000e+00> : vector<32x128xf32>
    %41 = tpu.matmul %40, %37, %cst_15 {dimension_numbers = #tpu.dot_dimension_numbers<[1], [0], [0], [1], [0, 0, 1, 1], [], []>} : vector<32x32xf32>, vector<32x128xf32>, vector<32x128xf32> -> vector<32x128xf32>
    %42 = arith.index_cast %arg0 : i32 to index
    %c0_16 = arith.constant 0 : index
    %c1 = arith.constant 1 : index
    %43 = vector.load %arg4[%42, %c0_16, %c1] : memref<2x32x11xf32, #tpu.memory_space<vmem>>, vector<1x32x1xf32>
    %44 = vector.shape_cast %43 : vector<1x32x1xf32> to vector<32x1xf32>
    %45 = vector.broadcast %44 : vector<32x1xf32> to vector<32x128xf32>
    %46 = arith.addf %41, %45 : vector<32x128xf32>
    %47 = math.tanh %46 : vector<32x128xf32>
    %cst_17 = arith.constant dense<0.000000e+00> : vector<32xf32>
    %48 = vector.multi_reduction <add>, %47, %cst_17 [1] : vector<32x128xf32> to vector<32xf32>
    %49 = vector.shape_cast %48 : vector<32xf32> to vector<32x1xf32>
    %cst_18 = arith.constant 7.812500e-03 : f32
    %50 = vector.broadcast %cst_18 : f32 to vector<32x1xf32>
    %51 = arith.mulf %49, %50 : vector<32x1xf32>
    %52 = arith.mulf %47, %47 : vector<32x128xf32>
    %cst_19 = arith.constant dense<0.000000e+00> : vector<32xf32>
    %53 = vector.multi_reduction <add>, %52, %cst_19 [1] : vector<32x128xf32> to vector<32xf32>
    %54 = vector.shape_cast %53 : vector<32xf32> to vector<32x1xf32>
    %cst_20 = arith.constant 7.812500e-03 : f32
    %55 = vector.broadcast %cst_20 : f32 to vector<32x1xf32>
    %56 = arith.mulf %54, %55 : vector<32x1xf32>
    %57 = arith.mulf %51, %51 : vector<32x1xf32>
    %58 = arith.subf %56, %57 : vector<32x1xf32>
    %cst_21 = arith.constant 9.99999974E-6 : f32
    %59 = vector.broadcast %cst_21 : f32 to vector<32x1xf32>
    %60 = arith.addf %58, %59 : vector<32x1xf32>
    %61 = math.rsqrt %60 : vector<32x1xf32>
    %62 = arith.index_cast %arg0 : i32 to index
    %c0_22 = arith.constant 0 : index
    %c4 = arith.constant 4 : index
    %63 = vector.load %arg4[%62, %c0_22, %c4] : memref<2x32x11xf32, #tpu.memory_space<vmem>>, vector<1x32x1xf32>
    %64 = vector.shape_cast %63 : vector<1x32x1xf32> to vector<32x1xf32>
    %65 = arith.mulf %61, %64 : vector<32x1xf32>
    %66 = arith.index_cast %arg0 : i32 to index
    %c0_23 = arith.constant 0 : index
    %c7 = arith.constant 7 : index
    %67 = vector.load %arg4[%66, %c0_23, %c7] : memref<2x32x11xf32, #tpu.memory_space<vmem>>, vector<1x32x1xf32>
    %68 = vector.shape_cast %67 : vector<1x32x1xf32> to vector<32x1xf32>
    %69 = arith.mulf %51, %65 : vector<32x1xf32>
    %70 = arith.subf %68, %69 : vector<32x1xf32>
    %71 = vector.broadcast %65 : vector<32x1xf32> to vector<32x128xf32>
    %72 = arith.mulf %47, %71 : vector<32x128xf32>
    %73 = vector.broadcast %70 : vector<32x1xf32> to vector<32x128xf32>
    %74 = arith.addf %72, %73 : vector<32x128xf32>
    %75 = arith.addf %74, %37 : vector<32x128xf32>
    %76 = arith.index_cast %arg0 : i32 to index
    %c1_24 = arith.constant 1 : index
    %c0_25 = arith.constant 0 : index
    %c0_26 = arith.constant 0 : index
    %77 = vector.load %arg3[%76, %c1_24, %c0_25, %c0_26] : memref<2x2x32x32xf32, #tpu.memory_space<vmem>>, vector<1x1x32x32xf32>
    %78 = vector.shape_cast %77 : vector<1x1x32x32xf32> to vector<32x32xf32>
    %cst_27 = arith.constant dense<0.000000e+00> : vector<32x128xf32>
    %79 = tpu.matmul %78, %75, %cst_27 {dimension_numbers = #tpu.dot_dimension_numbers<[1], [0], [0], [1], [0, 0, 1, 1], [], []>} : vector<32x32xf32>, vector<32x128xf32>, vector<32x128xf32> -> vector<32x128xf32>
    %80 = arith.index_cast %arg0 : i32 to index
    %c0_28 = arith.constant 0 : index
    %c2 = arith.constant 2 : index
    %81 = vector.load %arg4[%80, %c0_28, %c2] : memref<2x32x11xf32, #tpu.memory_space<vmem>>, vector<1x32x1xf32>
    %82 = vector.shape_cast %81 : vector<1x32x1xf32> to vector<32x1xf32>
    %83 = vector.broadcast %82 : vector<32x1xf32> to vector<32x128xf32>
    %84 = arith.addf %79, %83 : vector<32x128xf32>
    %85 = math.tanh %84 : vector<32x128xf32>
    %cst_29 = arith.constant dense<0.000000e+00> : vector<32xf32>
    %86 = vector.multi_reduction <add>, %85, %cst_29 [1] : vector<32x128xf32> to vector<32xf32>
    %87 = vector.shape_cast %86 : vector<32xf32> to vector<32x1xf32>
    %cst_30 = arith.constant 7.812500e-03 : f32
    %88 = vector.broadcast %cst_30 : f32 to vector<32x1xf32>
    %89 = arith.mulf %87, %88 : vector<32x1xf32>
    %90 = arith.mulf %85, %85 : vector<32x128xf32>
    %cst_31 = arith.constant dense<0.000000e+00> : vector<32xf32>
    %91 = vector.multi_reduction <add>, %90, %cst_31 [1] : vector<32x128xf32> to vector<32xf32>
    %92 = vector.shape_cast %91 : vector<32xf32> to vector<32x1xf32>
    %cst_32 = arith.constant 7.812500e-03 : f32
    %93 = vector.broadcast %cst_32 : f32 to vector<32x1xf32>
    %94 = arith.mulf %92, %93 : vector<32x1xf32>
    %95 = arith.mulf %89, %89 : vector<32x1xf32>
    %96 = arith.subf %94, %95 : vector<32x1xf32>
    %cst_33 = arith.constant 9.99999974E-6 : f32
    %97 = vector.broadcast %cst_33 : f32 to vector<32x1xf32>
    %98 = arith.addf %96, %97 : vector<32x1xf32>
    %99 = math.rsqrt %98 : vector<32x1xf32>
    %100 = arith.index_cast %arg0 : i32 to index
    %c0_34 = arith.constant 0 : index
    %c5 = arith.constant 5 : index
    %101 = vector.load %arg4[%100, %c0_34, %c5] : memref<2x32x11xf32, #tpu.memory_space<vmem>>, vector<1x32x1xf32>
    %102 = vector.shape_cast %101 : vector<1x32x1xf32> to vector<32x1xf32>
    %103 = arith.mulf %99, %102 : vector<32x1xf32>
    %104 = arith.index_cast %arg0 : i32 to index
    %c0_35 = arith.constant 0 : index
    %c8 = arith.constant 8 : index
    %105 = vector.load %arg4[%104, %c0_35, %c8] : memref<2x32x11xf32, #tpu.memory_space<vmem>>, vector<1x32x1xf32>
    %106 = vector.shape_cast %105 : vector<1x32x1xf32> to vector<32x1xf32>
    %107 = arith.mulf %89, %103 : vector<32x1xf32>
    %108 = arith.subf %106, %107 : vector<32x1xf32>
    %109 = vector.broadcast %103 : vector<32x1xf32> to vector<32x128xf32>
    %110 = arith.mulf %85, %109 : vector<32x128xf32>
    %111 = vector.broadcast %108 : vector<32x1xf32> to vector<32x128xf32>
    %112 = arith.addf %110, %111 : vector<32x128xf32>
    %113 = arith.addf %112, %75 : vector<32x128xf32>
    %114 = arith.index_cast %arg0 : i32 to index
    %c0_36 = arith.constant 0 : index
    %c9 = arith.constant 9 : index
    %115 = vector.load %arg4[%114, %c0_36, %c9] : memref<2x32x11xf32, #tpu.memory_space<vmem>>, vector<1x32x1xf32>
    %116 = vector.shape_cast %115 : vector<1x32x1xf32> to vector<32x1xf32>
    %117 = arith.index_cast %arg0 : i32 to index
    %c0_37 = arith.constant 0 : index
    %c10 = arith.constant 10 : index
    %118 = vector.load %arg4[%117, %c0_37, %c10] : memref<2x32x11xf32, #tpu.memory_space<vmem>>, vector<1x1x1xf32>
    %119 = vector.shape_cast %118 : vector<1x1x1xf32> to vector<1x1xf32>
    %120 = vector.broadcast %116 : vector<32x1xf32> to vector<32x128xf32>
    %121 = arith.mulf %113, %120 : vector<32x128xf32>
    %cst_38 = arith.constant dense<0.000000e+00> : vector<128xf32>
    %122 = vector.multi_reduction <add>, %121, %cst_38 [0] : vector<32x128xf32> to vector<128xf32>
    %123 = vector.shape_cast %122 : vector<128xf32> to vector<1x128xf32>
    %124 = vector.broadcast %119 : vector<1x1xf32> to vector<1x128xf32>
    %125 = arith.addf %123, %124 : vector<1x128xf32>
    %c0_39 = arith.constant 0 : index
    %c0_40 = arith.constant 0 : index
    %c0_41 = arith.constant 0 : index
    %126 = vector.load %arg5[%c0_39, %c0_40, %c0_41] : memref<1x1x128xf32, #tpu.memory_space<vmem>>, vector<1x1x128xf32>
    %127 = vector.shape_cast %126 : vector<1x1x128xf32> to vector<1x128xf32>
    %128 = vector.shape_cast %125 : vector<1x128xf32> to vector<1x1x128xf32>
    tpu.vector_store %arg5[%c0_39, %c0_40, %c0_41], %128 {strides = array<i32>} : memref<1x1x128xf32, #tpu.memory_space<vmem>>, vector<1x1x128xf32>,
    return
  }
  func.func @transform_0(%arg0: i32) -> (i32, i32) {
    %c0_i32 = arith.constant 0 : i32
    %c0_i32_0 = arith.constant 0 : i32
    %c0_i32_1 = arith.constant 0 : i32
    return %c0_i32, %c0_i32_0 : i32, i32
  }
  func.func @transform_1(%arg0: i32) -> (i32, i32, i32) {
    %c0_i32 = arith.constant 0 : i32
    %c0_i32_0 = arith.constant 0 : i32
    %c0_i32_1 = arith.constant 0 : i32
    %c0_i32_2 = arith.constant 0 : i32
    return %c0_i32, %c0_i32_0, %c0_i32_1 : i32, i32, i32
  }
  func.func @transform_2(%arg0: i32) -> (i32, i32, i32, i32) {
    %c0_i32 = arith.constant 0 : i32
    %c0_i32_0 = arith.constant 0 : i32
    %c0_i32_1 = arith.constant 0 : i32
    %c0_i32_2 = arith.constant 0 : i32
    %c0_i32_3 = arith.constant 0 : i32
    return %c0_i32, %c0_i32_0, %c0_i32_1, %c0_i32_2 : i32, i32, i32, i32
  }
  func.func @transform_3(%arg0: i32) -> (i32, i32, i32) {
    %c0_i32 = arith.constant 0 : i32
    %c0_i32_0 = arith.constant 0 : i32
    %c0_i32_1 = arith.constant 0 : i32
    %c0_i32_2 = arith.constant 0 : i32
    return %c0_i32, %c0_i32_0, %c0_i32_1 : i32, i32, i32
  }
  func.func @transform_4(%arg0: i32) -> (i32, i32, i32) {
    %c0_i32 = arith.constant 0 : i32
    %c0_i32_0 = arith.constant 0 : i32
    %c0_i32_1 = arith.constant 0 : i32
    return %arg0, %c0_i32, %c0_i32_0 : i32, i32, i32
  }
}

</mosaic_0001>

<llo_original>
// kernel: tpu_custom_call.1
$region0: #{tpu_custom_call.1}
  #allocation0 [shape = 'u32[]', space=smem, size = 0x4, offset = 0x4, fixed_abs, tag = 'smem constant byte address 0x4 - core index']
  #allocation1 [shape = 'u32[144,128]{1,0:T(1,128)}', space=vmem, size = 0x12000, scoped, tag = 'internal scratch']
  %s0 = inlined_call_operand.vmem [shape: f32[5,128], index: 0, kind: input, shape index: {}]
  %s1 = inlined_call_operand.vmem [shape: f32[2,32,5], index: 1, kind: input, shape index: {}]
  %s2 = inlined_call_operand.vmem [shape: f32[2,2,32,32], index: 2, kind: input, shape index: {}]
  %s3 = inlined_call_operand.vmem [shape: f32[2,32,11], index: 3, kind: input, shape index: {}]
  %s4 = inlined_call_operand.hbm [shape: f32[2,1,128], index: 4, kind: output, shape index: {}]
  %s5 = sld [smem:[#allocation0]]
  $region49: #{tpu_custom_call.1} parent=0
    _
  %s7 = ssub.s32 1, %s5
  %s8 = scalar_select 0, %s7, %s5
  $region1: #{tpu_custom_call.1} parent=0
    #allocation2 [shape = 'u8[1024]{0}', space=vmem, size = 0x400, scoped, tag = 'output window, operand 0']
    #allocation3 [shape = 's32[2]{0}', space=sflag, size = 0x8, scoped, tag = 'scoped memory for tpu_custom_call.1']
    %9 = vsyncpa [#allocation3], 0
    %s10 = scalar_lea.sflag [#allocation3], 1
    %11 = vsyncpa %s10, 0
    loop: start=0, step=1, limit=4
    $region2: #{tpu_custom_call.1} parent=1 // loop_pre_header
      _
    $region3: #{tpu_custom_call.1} parent=1 // loop_header
      %s13 = sphi 0, %s17
      %p14 = scmp.ge.s32.totalorder %s13, 4
      %s21 = sphi 0, %s21
      %s23 = sphi 0, %s21
      %s24 = sphi 0, %s23
      %s38 = sphi 0, %s24
      %s42 = sphi 0, %s42
      %s44 = sphi 0, %s42
      %s45 = sphi 0, %s44
      %s59 = sphi 0, %s45
      %s63 = sphi 0, %s63
      %s65 = sphi 0, %s63
      %s66 = sphi 0, %s65
      %s80 = sphi 0, %s66
      %s84 = sphi 0, %s84
      %s86 = sphi 0, %s84
      %s87 = sphi 0, %s86
      %s101 = sphi 0, %s87
      %s107 = sphi 0, %s109
      %s110 = sphi 0, %s107
      %s111 = sphi 0, %s110
      %s127 = sphi 0, %s111
    $region4: #{tpu_custom_call.1} parent=1 // loop_header_branch
      %16 = sbr.rel (%p14) target = $region8
    $region5: #{tpu_custom_call.1} parent=1 // loop_body
      %s18 = ssub.s32 %s13, 1
      %s19 = ssub.s32 %s13, 2
      %s20 = sadd.s32 %s13, 1
      %s22 = sadd.s32 %s21, 1
      %p25 = scmp.eq.s32.totalorder %s13, 1
      %p26 = scmp.ne.s32.totalorder %s21, %s23
      %p27 = scmp.eq.s32.totalorder %s13, 0
      %p28 = por %p26, %p27
      %p29 = scmp.ne.s32.totalorder %s21, %s23
      %p30 = scmp.eq.s32.totalorder %s18, 1
      %p31 = por %p29, %p30
      %p32 = scmp.ne.s32.totalorder %s23, %s24
      %p33 = scmp.eq.s32.totalorder %s18, 0
      %p34 = por %p32, %p33
      %p35 = scmp.ne.s32.totalorder %s23, %s24
      %p36 = scmp.eq.s32.totalorder %s19, 1
      %p37 = por %p35, %p36
      %p39 = scmp.ne.s32.totalorder %s24, %s38
      %p40 = scmp.eq.s32.totalorder %s19, 0
      %p41 = por %p39, %p40
      %s43 = sadd.s32 %s42, 1
      %p46 = scmp.eq.s32.totalorder %s13, 1
      %p47 = scmp.ne.s32.totalorder %s42, %s44
      %p48 = scmp.eq.s32.totalorder %s13, 0
      %p49 = por %p47, %p48
      %p50 = scmp.ne.s32.totalorder %s42, %s44
      %p51 = scmp.eq.s32.totalorder %s18, 1
      %p52 = por %p50, %p51
      %p53 = scmp.ne.s32.totalorder %s44, %s45
      %p54 = scmp.eq.s32.totalorder %s18, 0
      %p55 = por %p53, %p54
      %p56 = scmp.ne.s32.totalorder %s44, %s45
      %p57 = scmp.eq.s32.totalorder %s19, 1
      %p58 = por %p56, %p57
      %p60 = scmp.ne.s32.totalorder %s45, %s59
      %p61 = scmp.eq.s32.totalorder %s19, 0
      %p62 = por %p60, %p61
      %s64 = sadd.s32 %s63, 1
      %p67 = scmp.eq.s32.totalorder %s13, 1
      %p68 = scmp.ne.s32.totalorder %s63, %s65
      %p69 = scmp.eq.s32.totalorder %s13, 0
      %p70 = por %p68, %p69
      %p71 = scmp.ne.s32.totalorder %s63, %s65
      %p72 = scmp.eq.s32.totalorder %s18, 1
      %p73 = por %p71, %p72
      %p74 = scmp.ne.s32.totalorder %s65, %s66
      %p75 = scmp.eq.s32.totalorder %s18, 0
      %p76 = por %p74, %p75
      %p77 = scmp.ne.s32.totalorder %s65, %s66
      %p78 = scmp.eq.s32.totalorder %s19, 1
      %p79 = por %p77, %p78
      %p81 = scmp.ne.s32.totalorder %s66, %s80
      %p82 = scmp.eq.s32.totalorder %s19, 0
      %p83 = por %p81, %p82
      %s85 = sadd.s32 %s84, 1
      %p88 = scmp.eq.s32.totalorder %s13, 1
      %p89 = scmp.ne.s32.totalorder %s84, %s86
      %p90 = scmp.eq.s32.totalorder %s13, 0
      %p91 = por %p89, %p90
      %p92 = scmp.ne.s32.totalorder %s84, %s86
      %p93 = scmp.eq.s32.totalorder %s18, 1
      %p94 = por %p92, %p93
      %p95 = scmp.ne.s32.totalorder %s86, %s87
      %p96 = scmp.eq.s32.totalorder %s18, 0
      %p97 = por %p95, %p96
      %p98 = scmp.ne.s32.totalorder %s86, %s87
      %p99 = scmp.eq.s32.totalorder %s19, 1
      %p100 = por %p98, %p99
      %p102 = scmp.ne.s32.totalorder %s87, %s101
      %p103 = scmp.eq.s32.totalorder %s19, 0
      %p104 = por %p102, %p103
      %s105 = ssub.s32 %s13, %s20
      %p106 = scmp.eq.s32.totalorder %s105, 0
      %s108 = sadd.s32 %s107, 1
      %s109 = scalar_select %p106, %s107, %s108
      %p112 = pneg %p106
      %p113 = scmp.eq.s32.totalorder %s13, 1
      %p114 = por %p112, %p113
      %p115 = scmp.ne.s32.totalorder %s107, %s110
      %p116 = scmp.eq.s32.totalorder %s13, 0
      %p117 = por %p115, %p116
      %p118 = scmp.ne.s32.totalorder %s107, %s110
      %p119 = scmp.eq.s32.totalorder %s18, 1
      %p120 = por %p118, %p119
      %p121 = scmp.ne.s32.totalorder %s110, %s111
      %p122 = scmp.eq.s32.totalorder %s18, 0
      %p123 = por %p121, %p122
      %p124 = scmp.ne.s32.totalorder %s110, %s111
      %p125 = scmp.eq.s32.totalorder %s19, 1
      %p126 = por %p124, %p125
      %p128 = scmp.ne.s32.totalorder %s111, %s127
      %p129 = scmp.eq.s32.totalorder %s19, 0
      %p130 = por %p128, %p129
      %p131 = scmp.le.s32.totalorder 1, %s13
      %p132 = scmp.lt.s32.totalorder %s13, 3
      %p133 = pnand %p131, %p132
      %p134 = pneg %p133
      // Predicated region
      $region9: #{tpu_custom_call.1} parent=5 // pred_check
        _
      $region10: #{tpu_custom_call.1} parent=5 // pred_check_branch
        %136 = sbr.rel (%p133) target = $region12
      $region11: #{tpu_custom_call.1} parent=5 // pred_region
        %s137 = ssub.s32 %s13, 1
        // Predicated region
        $region13: #{tpu_custom_call.1} parent=11 // pred_check
          %p138 = pneg %p34
        $region14: #{tpu_custom_call.1} parent=11 // pred_check_branch
          %140 = sbr.rel (%p138) target = $region16
        $region15: #{tpu_custom_call.1} parent=11 // pred_region
          _
        $region16: #{tpu_custom_call.1} parent=11 // pred_fallthru
          _
        // Predicated region
        $region17: #{tpu_custom_call.1} parent=11 // pred_check
          %p141 = pneg %p55
        $region18: #{tpu_custom_call.1} parent=11 // pred_check_branch
          %143 = sbr.rel (%p141) target = $region20
        $region19: #{tpu_custom_call.1} parent=11 // pred_region
          _
        $region20: #{tpu_custom_call.1} parent=11 // pred_fallthru
          _
        // Predicated region
        $region21: #{tpu_custom_call.1} parent=11 // pred_check
          %p144 = pneg %p76
        $region22: #{tpu_custom_call.1} parent=11 // pred_check_branch
          %146 = sbr.rel (%p144) target = $region24
        $region23: #{tpu_custom_call.1} parent=11 // pred_region
          _
        $region24: #{tpu_custom_call.1} parent=11 // pred_fallthru
          _
        // Predicated region
        $region25: #{tpu_custom_call.1} parent=11 // pred_check
          %p147 = pneg %p97
        $region26: #{tpu_custom_call.1} parent=11 // pred_check_branch
          %149 = sbr.rel (%p147) target = $region28
        $region27: #{tpu_custom_call.1} parent=11 // pred_region
          _
        $region28: #{tpu_custom_call.1} parent=11 // pred_fallthru
          _
      $region12: #{tpu_custom_call.1} parent=5 // pred_fallthru
        _
      %p150 = scmp.lt.s32.totalorder %s13, 2
      // Predicated region
      $region29: #{tpu_custom_call.1} parent=5 // pred_check
        %p151 = pneg %p150
      $region30: #{tpu_custom_call.1} parent=5 // pred_check_branch
        %153 = sbr.rel (%p151) target = $region32
      $region31: #{tpu_custom_call.1} parent=5 // pred_region
        _
      $region32: #{tpu_custom_call.1} parent=5 // pred_fallthru
        _
      %p154 = scmp.le.s32.totalorder 1, %s13
      %p155 = scmp.lt.s32.totalorder %s13, 3
      %p156 = pnand %p154, %p155
      %p157 = pneg %p156
      // Predicated region
      $region33: #{tpu_custom_call.1} parent=5 // pred_check
        _
      $region34: #{tpu_custom_call.1} parent=5 // pred_check_branch
        %159 = sbr.rel (%p156) target = $region36
      $region35: #{tpu_custom_call.1} parent=5 // pred_region
        %s160 = ssub.s32 %s13, 1
        %p161 = pneg %p34
        %p162 = pneg %p31
        %p163 = pneg %p55
        %p164 = pneg %p52
        %p165 = pneg %p76
        %p166 = pneg %p73
        %p167 = pneg %p97
        %p168 = pneg %p94
        %p169 = pneg %p123
        %p170 = pneg %p120
        %s171 = sand.u32 %s110, 1
        %s172 = scalar_lea.sflag [#allocation3], %s171
        %s173 = sand.u32 %s110, 1
        %s174 = scalar_lea.vmem [#allocation2], %s173
        %v175 = vld [vmem:[%s0] sm:$0x1f]
        %s176 = smul.u32 %s18, 32
        %s177 = scalar_lea.vmem %s1, %s176
        %v178 = vld [vmem:[%s177] sm:$0xff]
        %v179 = vld [vmem:[%s177 + $0x8] sm:$0xff]
        %v180 = vld [vmem:[%s177 + $0x10] sm:$0xff]
        %v181 = vld [vmem:[%s177 + $0x18] sm:$0xff]
        %s182 = scalar_lea.vmem %s3, %s176
        %v183 = vld [vmem:[%s182] sm:$0xff]
        %v184 = vld [vmem:[%s182 + $0x8] sm:$0xff]
        %v185 = vld [vmem:[%s182 + $0x10] sm:$0xff]
        %v186 = vld [vmem:[%s182 + $0x18] sm:$0xff]
        %188 = vset.pattern.permute.xlu0 0
        %189 = vperm.xlu0 %188, %v183
        %v190 = vpop.permute.xlu0 %189
        %193 = vset.pattern.permute.xlu0 0
        %194 = vperm.xlu0 %193, %v184
        %v195 = vpop.permute.xlu0 %194
        %198 = vset.pattern.permute.xlu0 0
        %199 = vperm.xlu0 %198, %v185
        %v200 = vpop.permute.xlu0 %199
        %203 = vset.pattern.permute.xlu0 0
        %204 = vperm.xlu0 %203, %v186
        %v205 = vpop.permute.xlu0 %204
        %vm207 = vcmask 39936
        %v209 = vsel %vm207, %v178, 0
        %v212 = vsel %vm207, %v179, 0
        %v215 = vsel %vm207, %v180, 0
        %v218 = vsel %vm207, %v181, 0
        %vm220 = vcmask 1044480
        %v222 = vsel %vm220, %v175, 0
        %224 = vmatprep.subr.mxu0 0.0
        %225 = vmatpush1.msra.mxu0 %v222
        %226 = vmatprep.subr.mxu0 0.0
        %227 = vmatpush1.msra.mxu0 0.0
        %228 = vmatprep.subr.mxu0 0.0
        %229 = vmatpush1.msra.mxu0 0.0
        %230 = vmatprep.subr.mxu0 0.0
        %231 = vmatpush1.msra.mxu0 0.0
        %232 = vmatprep.subr.mxu0 0.0
        %233 = vmatpush1.msra.mxu0 0.0
        %234 = vmatprep.subr.mxu0 0.0
        %235 = vmatpush1.msra.mxu0 0.0
        %236 = vmatprep.subr.mxu0 0.0
        %237 = vmatpush1.msra.mxu0 0.0
        %238 = vmatprep.subr.mxu0 0.0
        %239 = vmatpush1.msra.mxu0 0.0
        %240 = vmatprep.subr.mxu0 0.0
        %241 = vmatpush1.msra.mxu0 0.0
        %242 = vmatprep.subr.mxu0 0.0
        %243 = vmatpush1.msra.mxu0 0.0
        %244 = vmatprep.subr.mxu0 0.0
        %245 = vmatpush1.msra.mxu0 0.0
        %246 = vmatprep.subr.mxu0 0.0
        %247 = vmatpush1.msra.mxu0 0.0
        %248 = vmatprep.subr.mxu0 0.0
        %249 = vmatpush1.msra.mxu0 0.0
        %250 = vmatprep.subr.mxu0 0.0
        %251 = vmatpush1.msra.mxu0 0.0
        %252 = vmatprep.subr.mxu0 0.0
        %253 = vmatpush1.msra.mxu0 0.0
        %254 = vmatprep.subr.mxu0 0.0
        %255 = vmatpush1.msra.mxu0 0.0
        %256 = vmatprep.subr.mxu0 0.0
        %257 = vmatpush1.msra.mxu0 0.0
        %258 = vmatprep.subr.mxu0 0.0
        %259 = vmatpush1.msra.mxu0 0.0
        %260 = vmatprep.subr.mxu0 0.0
        %261 = vmatpush1.msra.mxu0 0.0
        %262 = vmatprep.subr.mxu0 0.0
        %263 = vmatpush1.msra.mxu0 0.0
        %264 = vmatprep.subr.mxu0 0.0
        %265 = vmatpush1.msra.mxu0 0.0
        %266 = vmatprep.subr.mxu0 0.0
        %267 = vmatpush1.msra.mxu0 0.0
        %268 = vmatprep.subr.mxu0 0.0
        %269 = vmatpush1.msra.mxu0 0.0
        %270 = vmatprep.subr.mxu0 0.0
        %271 = vmatpush1.msra.mxu0 0.0
        %272 = vmatprep.subr.mxu0 0.0
        %273 = vmatpush1.msra.mxu0 0.0
        %274 = vmatprep.subr.mxu0 0.0
        %275 = vmatpush1.msra.mxu0 0.0
        %276 = vmatprep.subr.mxu0 0.0
        %277 = vmatpush1.msra.mxu0 0.0
        %278 = vmatprep.subr.mxu0 0.0
        %279 = vmatpush1.msra.mxu0 0.0
        %280 = vmatprep.subr.mxu0 0.0
        %281 = vmatpush1.msra.mxu0 0.0
        %282 = vmatprep.subr.mxu0 0.0
        %283 = vmatpush1.msra.mxu0 0.0
        %284 = vmatprep.subr.mxu0 0.0
        %285 = vmatpush1.msra.mxu0 0.0
        %286 = vmatprep.subr.mxu0 0.0
        %287 = vmatpush1.msra.mxu0 0.0
        %288 = vmatprep.mubr.f32.mxu0 0.0
        %289 = vmatmul.mubr.f32.gmra.mrb[0].mxu0 %v209
        %v290 = vpop.f32.mrb[0].mxu0
        %v291 = vadd.f32 %v190, %v290
        %v292 = vpop.f32.mrb[0].mxu0
        %293 = vmatprep.mubr.f32.mxu0 0.0
        %294 = vmatmul.mubr.f32.gmra.mrb[0].mxu0 %v212
        %v295 = vpop.f32.mrb[0].mxu0
        %v296 = vadd.f32 %v195, %v295
        %v297 = vpop.f32.mrb[0].mxu0
        %298 = vmatprep.mubr.f32.mxu0 0.0
        %299 = vmatmul.mubr.f32.gmra.mrb[0].mxu0 %v215
        %v300 = vpop.f32.mrb[0].mxu0
        %v301 = vadd.f32 %v200, %v300
        %v302 = vpop.f32.mrb[0].mxu0
        %303 = vmatprep.mubr.f32.mxu0 0.0
        %304 = vmatmul.mubr.f32.gmra.mrb[0].mxu0 %v218
        %v305 = vpop.f32.mrb[0].mxu0
        %v306 = vadd.f32 %v205, %v305
        %v307 = vpop.f32.mrb[0].mxu0
        %308 = vdwg.mxu0
        %v309 = vtanh.pop %v291
        %v310 = vtanh.pop %v296
        %v311 = vtanh.pop %v301
        %v312 = vtanh.pop %v306
        %313 = vadd.xlane.f32.xlu0 %v309
        %v314 = vpop.xlane.xlu0 %313
        %315 = vadd.xlane.f32.xlu0 %v310
        %v316 = vpop.xlane.xlu0 %315
        %317 = vadd.xlane.f32.xlu0 %v311
        %v318 = vpop.xlane.xlu0 %317
        %319 = vadd.xlane.f32.xlu0 %v312
        %v320 = vpop.xlane.xlu0 %319
        %v321 = vmul.f32 %v314, 0.0078125
        %v322 = vmul.f32 %v316, 0.0078125
        %v323 = vmul.f32 %v318, 0.0078125
        %v324 = vmul.f32 %v320, 0.0078125
        %v325 = vmul.f32 %v309, %v309
        %v326 = vmul.f32 %v310, %v310
        %v327 = vmul.f32 %v311, %v311
        %v328 = vmul.f32 %v312, %v312
        %329 = vadd.xlane.f32.xlu0 %v325
        %v330 = vpop.xlane.xlu0 %329
        %331 = vadd.xlane.f32.xlu0 %v326
        %v332 = vpop.xlane.xlu0 %331
        %333 = vadd.xlane.f32.xlu0 %v327
        %v334 = vpop.xlane.xlu0 %333
        %335 = vadd.xlane.f32.xlu0 %v328
        %v336 = vpop.xlane.xlu0 %335
        %v337 = vmul.f32 %v330, 0.0078125
        %v338 = vmul.f32 %v332, 0.0078125
        %v339 = vmul.f32 %v334, 0.0078125
        %v340 = vmul.f32 %v336, 0.0078125
        %v341 = vmul.f32 %v321, %v321
        %v342 = vmul.f32 %v322, %v322
        %v343 = vmul.f32 %v323, %v323
        %v344 = vmul.f32 %v324, %v324
        %v345 = vsub.f32 %v337, %v341
        %v346 = vsub.f32 %v338, %v342
        %v347 = vsub.f32 %v339, %v343
        %v348 = vsub.f32 %v340, %v344
        %v349 = vadd.f32 %v345, 1e-05
        %v350 = vadd.f32 %v346, 1e-05
        %v351 = vadd.f32 %v347, 1e-05
        %v352 = vadd.f32 %v348, 1e-05
        %v353 = vrsqrt.pop %v349
        %v354 = vrsqrt.pop %v350
        %v355 = vrsqrt.pop %v351
        %v356 = vrsqrt.pop %v352
        %v357 = vmul.f32 %v353, %v183
        %v358 = vmul.f32 %v354, %v184
        %v359 = vmul.f32 %v355, %v185
        %v360 = vmul.f32 %v356, %v186
        %v361 = vmul.f32 %v321, %v357
        %v362 = vmul.f32 %v322, %v358
        %v363 = vmul.f32 %v323, %v359
        %v364 = vmul.f32 %v324, %v360
        %369 = vrot.lane.b32.xlu0 %v361, 3
        %v370 = vpop.permute.xlu0 %369
        %371 = vrot.lane.b32.xlu0 %v362, 3
        %v372 = vpop.permute.xlu0 %371
        %373 = vrot.lane.b32.xlu0 %v363, 3
        %v374 = vpop.permute.xlu0 %373
        %375 = vrot.lane.b32.xlu0 %v364, 3
        %v376 = vpop.permute.xlu0 %375
        %v381 = vsub.f32 %v183, %v370
        %v382 = vsub.f32 %v184, %v372
        %v383 = vsub.f32 %v185, %v374
        %v384 = vsub.f32 %v186, %v376
        %386 = vset.pattern.permute.xlu0 3
        %387 = vperm.xlu0 %386, %v357
        %v388 = vpop.permute.xlu0 %387
        %391 = vset.pattern.permute.xlu0 3
        %392 = vperm.xlu0 %391, %v358
        %v393 = vpop.permute.xlu0 %392
        %396 = vset.pattern.permute.xlu0 3
        %397 = vperm.xlu0 %396, %v359
        %v398 = vpop.permute.xlu0 %397
        %401 = vset.pattern.permute.xlu0 3
        %402 = vperm.xlu0 %401, %v360
        %v403 = vpop.permute.xlu0 %402
        %v405 = vmul.f32 %v309, %v388
        %v406 = vmul.f32 %v310, %v393
        %v407 = vmul.f32 %v311, %v398
        %v408 = vmul.f32 %v312, %v403
        %410 = vset.pattern.permute.xlu0 6
        %411 = vperm.xlu0 %410, %v381
        %v412 = vpop.permute.xlu0 %411
        %415 = vset.pattern.permute.xlu0 6
        %416 = vperm.xlu0 %415, %v382
        %v417 = vpop.permute.xlu0 %416
        %420 = vset.pattern.permute.xlu0 6
        %421 = vperm.xlu0 %420, %v383
        %v422 = vpop.permute.xlu0 %421
        %425 = vset.pattern.permute.xlu0 6
        %426 = vperm.xlu0 %425, %v384
        %v427 = vpop.permute.xlu0 %426
        %v429 = vadd.f32 %v405, %v412
        %v430 = vadd.f32 %v406, %v417
        %v431 = vadd.f32 %v407, %v422
        %v432 = vadd.f32 %v408, %v427
        %s433 = smul.u32 %s18, 64
        %s434 = scalar_lea.vmem %s2, %s433
        %v435 = vld [vmem:[%s434] sm:$0xff]
        %v436 = vld [vmem:[%s434 + $0x8] sm:$0xff]
        %v437 = vld [vmem:[%s434 + $0x10] sm:$0xff]
        %v438 = vld [vmem:[%s434 + $0x18] sm:$0xff]
        %439 = vset.pattern.permute.xlu0 1
        %440 = vperm.xlu0 %439, %v183
        %v441 = vpop.permute.xlu0 %440
        %443 = vset.pattern.permute.xlu0 1
        %444 = vperm.xlu0 %443, %v184
        %v445 = vpop.permute.xlu0 %444
        %447 = vset.pattern.permute.xlu0 1
        %448 = vperm.xlu0 %447, %v185
        %v449 = vpop.permute.xlu0 %448
        %451 = vset.pattern.permute.xlu0 1
        %452 = vperm.xlu0 %451, %v186
        %v453 = vpop.permute.xlu0 %452
        %vm455 = vcmask 261120
        %v457 = vsel %vm455, %v435, 0
        %v460 = vsel %vm455, %v436, 0
        %v463 = vsel %vm455, %v437, 0
        %v466 = vsel %vm455, %v438, 0
        %468 = vmatprep.subr.mxu0 0.0
        %469 = vmatpush1.msra.mxu0 %v429
        %470 = vmatprep.subr.mxu0 0.0
        %471 = vmatpush1.msra.mxu0 %v430
        %472 = vmatprep.subr.mxu0 0.0
        %473 = vmatpush1.msra.mxu0 %v431
        %474 = vmatprep.subr.mxu0 0.0
        %475 = vmatpush1.msra.mxu0 %v432
        %476 = vmatprep.subr.mxu0 0.0
        %477 = vmatpush1.msra.mxu0 0.0
        %478 = vmatprep.subr.mxu0 0.0
        %479 = vmatpush1.msra.mxu0 0.0
        %480 = vmatprep.subr.mxu0 0.0
        %481 = vmatpush1.msra.mxu0 0.0
        %482 = vmatprep.subr.mxu0 0.0
        %483 = vmatpush1.msra.mxu0 0.0
        %484 = vmatprep.subr.mxu0 0.0
        %485 = vmatpush1.msra.mxu0 0.0
        %486 = vmatprep.subr.mxu0 0.0
        %487 = vmatpush1.msra.mxu0 0.0
        %488 = vmatprep.subr.mxu0 0.0
        %489 = vmatpush1.msra.mxu0 0.0
        %490 = vmatprep.subr.mxu0 0.0
        %491 = vmatpush1.msra.mxu0 0.0
        %492 = vmatprep.subr.mxu0 0.0
        %493 = vmatpush1.msra.mxu0 0.0
        %494 = vmatprep.subr.mxu0 0.0
        %495 = vmatpush1.msra.mxu0 0.0
        %496 = vmatprep.subr.mxu0 0.0
        %497 = vmatpush1.msra.mxu0 0.0
        %498 = vmatprep.subr.mxu0 0.0
        %499 = vmatpush1.msra.mxu0 0.0
        %500 = vmatprep.subr.mxu0 0.0
        %501 = vmatpush1.msra.mxu0 0.0
        %502 = vmatprep.subr.mxu0 0.0
        %503 = vmatpush1.msra.mxu0 0.0
        %504 = vmatprep.subr.mxu0 0.0
        %505 = vmatpush1.msra.mxu0 0.0
        %506 = vmatprep.subr.mxu0 0.0
        %507 = vmatpush1.msra.mxu0 0.0
        %508 = vmatprep.subr.mxu0 0.0
        %509 = vmatpush1.msra.mxu0 0.0
        %510 = vmatprep.subr.mxu0 0.0
        %511 = vmatpush1.msra.mxu0 0.0
        %512 = vmatprep.subr.mxu0 0.0
        %513 = vmatpush1.msra.mxu0 0.0
        %514 = vmatprep.subr.mxu0 0.0
        %515 = vmatpush1.msra.mxu0 0.0
        %516 = vmatprep.subr.mxu0 0.0
        %517 = vmatpush1.msra.mxu0 0.0
        %518 = vmatprep.subr.mxu0 0.0
        %519 = vmatpush1.msra.mxu0 0.0
        %520 = vmatprep.subr.mxu0 0.0
        %521 = vmatpush1.msra.mxu0 0.0
        %522 = vmatprep.subr.mxu0 0.0
        %523 = vmatpush1.msra.mxu0 0.0
        %524 = vmatprep.subr.mxu0 0.0
        %525 = vmatpush1.msra.mxu0 0.0
        %526 = vmatprep.subr.mxu0 0.0
        %527 = vmatpush1.msra.mxu0 0.0
        %528 = vmatprep.subr.mxu0 0.0
        %529 = vmatpush1.msra.mxu0 0.0
        %530 = vmatprep.subr.mxu0 0.0
        %531 = vmatpush1.msra.mxu0 0.0
        %532 = vmatprep.mubr.f32.mxu0 0.0
        %533 = vmatmul.mubr.f32.gmra.mrb[0].mxu0 %v457
        %v534 = vpop.f32.mrb[0].mxu0
        %v535 = vadd.f32 %v441, %v534
        %v536 = vpop.f32.mrb[0].mxu0
        %537 = vmatprep.mubr.f32.mxu0 0.0
        %538 = vmatmul.mubr.f32.gmra.mrb[0].mxu0 %v460
        %v539 = vpop.f32.mrb[0].mxu0
        %v540 = vadd.f32 %v445, %v539
        %v541 = vpop.f32.mrb[0].mxu0
        %542 = vmatprep.mubr.f32.mxu0 0.0
        %543 = vmatmul.mubr.f32.gmra.mrb[0].mxu0 %v463
        %v544 = vpop.f32.mrb[0].mxu0
        %v545 = vadd.f32 %v449, %v544
        %v546 = vpop.f32.mrb[0].mxu0
        %547 = vmatprep.mubr.f32.mxu0 0.0
        %548 = vmatmul.mubr.f32.gmra.mrb[0].mxu0 %v466
        %v549 = vpop.f32.mrb[0].mxu0
        %v550 = vadd.f32 %v453, %v549
        %v551 = vpop.f32.mrb[0].mxu0
        %552 = vdwg.mxu0
        %v553 = vtanh.pop %v535
        %v554 = vtanh.pop %v540
        %v555 = vtanh.pop %v545
        %v556 = vtanh.pop %v550
        %557 = vadd.xlane.f32.xlu0 %v553
        %v558 = vpop.xlane.xlu0 %557
        %559 = vadd.xlane.f32.xlu0 %v554
        %v560 = vpop.xlane.xlu0 %559
        %561 = vadd.xlane.f32.xlu0 %v555
        %v562 = vpop.xlane.xlu0 %561
        %563 = vadd.xlane.f32.xlu0 %v556
        %v564 = vpop.xlane.xlu0 %563
        %v565 = vmul.f32 %v558, 0.0078125
        %v566 = vmul.f32 %v560, 0.0078125
        %v567 = vmul.f32 %v562, 0.0078125
        %v568 = vmul.f32 %v564, 0.0078125
        %v569 = vmul.f32 %v553, %v553
        %v570 = vmul.f32 %v554, %v554
        %v571 = vmul.f32 %v555, %v555
        %v572 = vmul.f32 %v556, %v556
        %573 = vadd.xlane.f32.xlu0 %v569
        %v574 = vpop.xlane.xlu0 %573
        %575 = vadd.xlane.f32.xlu0 %v570
        %v576 = vpop.xlane.xlu0 %575
        %577 = vadd.xlane.f32.xlu0 %v571
        %v578 = vpop.xlane.xlu0 %577
        %579 = vadd.xlane.f32.xlu0 %v572
        %v580 = vpop.xlane.xlu0 %579
        %v581 = vmul.f32 %v574, 0.0078125
        %v582 = vmul.f32 %v576, 0.0078125
        %v583 = vmul.f32 %v578, 0.0078125
        %v584 = vmul.f32 %v580, 0.0078125
        %v585 = vmul.f32 %v565, %v565
        %v586 = vmul.f32 %v566, %v566
        %v587 = vmul.f32 %v567, %v567
        %v588 = vmul.f32 %v568, %v568
        %v589 = vsub.f32 %v581, %v585
        %v590 = vsub.f32 %v582, %v586
        %v591 = vsub.f32 %v583, %v587
        %v592 = vsub.f32 %v584, %v588
        %v593 = vadd.f32 %v589, 1e-05
        %v594 = vadd.f32 %v590, 1e-05
        %v595 = vadd.f32 %v591, 1e-05
        %v596 = vadd.f32 %v592, 1e-05
        %v597 = vrsqrt.pop %v593
        %v598 = vrsqrt.pop %v594
        %v599 = vrsqrt.pop %v595
        %v600 = vrsqrt.pop %v596
        %v601 = vmul.f32 %v597, %v183
        %v602 = vmul.f32 %v598, %v184
        %v603 = vmul.f32 %v599, %v185
        %v604 = vmul.f32 %v600, %v186
        %v605 = vmul.f32 %v565, %v601
        %v606 = vmul.f32 %v566, %v602
        %v607 = vmul.f32 %v567, %v603
        %v608 = vmul.f32 %v568, %v604
        %613 = vrot.lane.b32.xlu0 %v605, 3
        %v614 = vpop.permute.xlu0 %613
        %615 = vrot.lane.b32.xlu0 %v606, 3
        %v616 = vpop.permute.xlu0 %615
        %617 = vrot.lane.b32.xlu0 %v607, 3
        %v618 = vpop.permute.xlu0 %617
        %619 = vrot.lane.b32.xlu0 %v608, 3
        %v620 = vpop.permute.xlu0 %619
        %v625 = vsub.f32 %v183, %v614
        %v626 = vsub.f32 %v184, %v616
        %v627 = vsub.f32 %v185, %v618
        %v628 = vsub.f32 %v186, %v620
        %630 = vset.pattern.permute.xlu0 4
        %631 = vperm.xlu0 %630, %v601
        %v632 = vpop.permute.xlu0 %631
        %635 = vset.pattern.permute.xlu0 4
        %636 = vperm.xlu0 %635, %v602
        %v637 = vpop.permute.xlu0 %636
        %640 = vset.pattern.permute.xlu0 4
        %641 = vperm.xlu0 %640, %v603
        %v642 = vpop.permute.xlu0 %641
        %645 = vset.pattern.permute.xlu0 4
        %646 = vperm.xlu0 %645, %v604
        %v647 = vpop.permute.xlu0 %646
        %v649 = vmul.f32 %v553, %v632
        %v650 = vmul.f32 %v554, %v637
        %v651 = vmul.f32 %v555, %v642
        %v652 = vmul.f32 %v556, %v647
        %654 = vset.pattern.permute.xlu0 7
        %655 = vperm.xlu0 %654, %v625
        %v656 = vpop.permute.xlu0 %655
        %659 = vset.pattern.permute.xlu0 7
        %660 = vperm.xlu0 %659, %v626
        %v661 = vpop.permute.xlu0 %660
        %664 = vset.pattern.permute.xlu0 7
        %665 = vperm.xlu0 %664, %v627
        %v666 = vpop.permute.xlu0 %665
        %669 = vset.pattern.permute.xlu0 7
        %670 = vperm.xlu0 %669, %v628
        %v671 = vpop.permute.xlu0 %670
        %v673 = vadd.f32 %v649, %v656
        %v674 = vadd.f32 %v650, %v661
        %v675 = vadd.f32 %v651, %v666
        %v676 = vadd.f32 %v652, %v671
        %v677 = vadd.f32 %v673, %v429
        %v678 = vadd.f32 %v674, %v430
        %v679 = vadd.f32 %v675, %v431
        %v680 = vadd.f32 %v676, %v432
        %s681 = sadd.s32 32, %s433
        %s682 = scalar_lea.vmem %s2, %s681
        %v683 = vld [vmem:[%s682] sm:$0xff]
        %v684 = vld [vmem:[%s682 + $0x8] sm:$0xff]
        %v685 = vld [vmem:[%s682 + $0x10] sm:$0xff]
        %v686 = vld [vmem:[%s682 + $0x18] sm:$0xff]
        %687 = vset.pattern.permute.xlu0 2
        %688 = vperm.xlu0 %687, %v183
        %v689 = vpop.permute.xlu0 %688
        %691 = vset.pattern.permute.xlu0 2
        %692 = vperm.xlu0 %691, %v184
        %v693 = vpop.permute.xlu0 %692
        %695 = vset.pattern.permute.xlu0 2
        %696 = vperm.xlu0 %695, %v185
        %v697 = vpop.permute.xlu0 %696
        %699 = vset.pattern.permute.xlu0 2
        %700 = vperm.xlu0 %699, %v186
        %v701 = vpop.permute.xlu0 %700
        %v704 = vsel %vm455, %v683, 0
        %v707 = vsel %vm455, %v684, 0
        %v710 = vsel %vm455, %v685, 0
        %v713 = vsel %vm455, %v686, 0
        %715 = vmatprep.subr.mxu0 0.0
        %716 = vmatpush1.msra.mxu0 %v677
        %717 = vmatprep.subr.mxu0 0.0
        %718 = vmatpush1.msra.mxu0 %v678
        %719 = vmatprep.subr.mxu0 0.0
        %720 = vmatpush1.msra.mxu0 %v679
        %721 = vmatprep.subr.mxu0 0.0
        %722 = vmatpush1.msra.mxu0 %v680
        %723 = vmatprep.subr.mxu0 0.0
        %724 = vmatpush1.msra.mxu0 0.0
        %725 = vmatprep.subr.mxu0 0.0
        %726 = vmatpush1.msra.mxu0 0.0
        %727 = vmatprep.subr.mxu0 0.0
        %728 = vmatpush1.msra.mxu0 0.0
        %729 = vmatprep.subr.mxu0 0.0
        %730 = vmatpush1.msra.mxu0 0.0
        %731 = vmatprep.subr.mxu0 0.0
        %732 = vmatpush1.msra.mxu0 0.0
        %733 = vmatprep.subr.mxu0 0.0
        %734 = vmatpush1.msra.mxu0 0.0
        %735 = vmatprep.subr.mxu0 0.0
        %736 = vmatpush1.msra.mxu0 0.0
        %737 = vmatprep.subr.mxu0 0.0
        %738 = vmatpush1.msra.mxu0 0.0
        %739 = vmatprep.subr.mxu0 0.0
        %740 = vmatpush1.msra.mxu0 0.0
        %741 = vmatprep.subr.mxu0 0.0
        %742 = vmatpush1.msra.mxu0 0.0
        %743 = vmatprep.subr.mxu0 0.0
        %744 = vmatpush1.msra.mxu0 0.0
        %745 = vmatprep.subr.mxu0 0.0
        %746 = vmatpush1.msra.mxu0 0.0
        %747 = vmatprep.subr.mxu0 0.0
        %748 = vmatpush1.msra.mxu0 0.0
        %749 = vmatprep.subr.mxu0 0.0
        %750 = vmatpush1.msra.mxu0 0.0
        %751 = vmatprep.subr.mxu0 0.0
        %752 = vmatpush1.msra.mxu0 0.0
        %753 = vmatprep.subr.mxu0 0.0
        %754 = vmatpush1.msra.mxu0 0.0
        %755 = vmatprep.subr.mxu0 0.0
        %756 = vmatpush1.msra.mxu0 0.0
        %757 = vmatprep.subr.mxu0 0.0
        %758 = vmatpush1.msra.mxu0 0.0
        %759 = vmatprep.subr.mxu0 0.0
        %760 = vmatpush1.msra.mxu0 0.0
        %761 = vmatprep.subr.mxu0 0.0
        %762 = vmatpush1.msra.mxu0 0.0
        %763 = vmatprep.subr.mxu0 0.0
        %764 = vmatpush1.msra.mxu0 0.0
        %765 = vmatprep.subr.mxu0 0.0
        %766 = vmatpush1.msra.mxu0 0.0
        %767 = vmatprep.subr.mxu0 0.0
        %768 = vmatpush1.msra.mxu0 0.0
        %769 = vmatprep.subr.mxu0 0.0
        %770 = vmatpush1.msra.mxu0 0.0
        %771 = vmatprep.subr.mxu0 0.0
        %772 = vmatpush1.msra.mxu0 0.0
        %773 = vmatprep.subr.mxu0 0.0
        %774 = vmatpush1.msra.mxu0 0.0
        %775 = vmatprep.subr.mxu0 0.0
        %776 = vmatpush1.msra.mxu0 0.0
        %777 = vmatprep.subr.mxu0 0.0
        %778 = vmatpush1.msra.mxu0 0.0
        %779 = vmatprep.mubr.f32.mxu0 0.0
        %780 = vmatmul.mubr.f32.gmra.mrb[0].mxu0 %v704
        %v781 = vpop.f32.mrb[0].mxu0
        %v782 = vadd.f32 %v689, %v781
        %v783 = vpop.f32.mrb[0].mxu0
        %784 = vmatprep.mubr.f32.mxu0 0.0
        %785 = vmatmul.mubr.f32.gmra.mrb[0].mxu0 %v707
        %v786 = vpop.f32.mrb[0].mxu0
        %v787 = vadd.f32 %v693, %v786
        %v788 = vpop.f32.mrb[0].mxu0
        %789 = vmatprep.mubr.f32.mxu0 0.0
        %790 = vmatmul.mubr.f32.gmra.mrb[0].mxu0 %v710
        %v791 = vpop.f32.mrb[0].mxu0
        %v792 = vadd.f32 %v697, %v791
        %v793 = vpop.f32.mrb[0].mxu0
        %794 = vmatprep.mubr.f32.mxu0 0.0
        %795 = vmatmul.mubr.f32.gmra.mrb[0].mxu0 %v713
        %v796 = vpop.f32.mrb[0].mxu0
        %v797 = vadd.f32 %v701, %v796
        %v798 = vpop.f32.mrb[0].mxu0
        %799 = vdwg.mxu0
        %v800 = vtanh.pop %v782
        %v801 = vtanh.pop %v787
        %v802 = vtanh.pop %v792
        %v803 = vtanh.pop %v797
        %804 = vadd.xlane.f32.xlu0 %v800
        %v805 = vpop.xlane.xlu0 %804
        %806 = vadd.xlane.f32.xlu0 %v801
        %v807 = vpop.xlane.xlu0 %806
        %808 = vadd.xlane.f32.xlu0 %v802
        %v809 = vpop.xlane.xlu0 %808
        %810 = vadd.xlane.f32.xlu0 %v803
        %v811 = vpop.xlane.xlu0 %810
        %v812 = vmul.f32 %v805, 0.0078125
        %v813 = vmul.f32 %v807, 0.0078125
        %v814 = vmul.f32 %v809, 0.0078125
        %v815 = vmul.f32 %v811, 0.0078125
        %v816 = vmul.f32 %v800, %v800
        %v817 = vmul.f32 %v801, %v801
        %v818 = vmul.f32 %v802, %v802
        %v819 = vmul.f32 %v803, %v803
        %820 = vadd.xlane.f32.xlu0 %v816
        %v821 = vpop.xlane.xlu0 %820
        %822 = vadd.xlane.f32.xlu0 %v817
        %v823 = vpop.xlane.xlu0 %822
        %824 = vadd.xlane.f32.xlu0 %v818
        %v825 = vpop.xlane.xlu0 %824
        %826 = vadd.xlane.f32.xlu0 %v819
        %v827 = vpop.xlane.xlu0 %826
        %v828 = vmul.f32 %v821, 0.0078125
        %v829 = vmul.f32 %v823, 0.0078125
        %v830 = vmul.f32 %v825, 0.0078125
        %v831 = vmul.f32 %v827, 0.0078125
        %v832 = vmul.f32 %v812, %v812
        %v833 = vmul.f32 %v813, %v813
        %v834 = vmul.f32 %v814, %v814
        %v835 = vmul.f32 %v815, %v815
        %v836 = vsub.f32 %v828, %v832
        %v837 = vsub.f32 %v829, %v833
        %v838 = vsub.f32 %v830, %v834
        %v839 = vsub.f32 %v831, %v835
        %v840 = vadd.f32 %v836, 1e-05
        %v841 = vadd.f32 %v837, 1e-05
        %v842 = vadd.f32 %v838, 1e-05
        %v843 = vadd.f32 %v839, 1e-05
        %v844 = vrsqrt.pop %v840
        %v845 = vrsqrt.pop %v841
        %v846 = vrsqrt.pop %v842
        %v847 = vrsqrt.pop %v843
        %v848 = vmul.f32 %v844, %v183
        %v849 = vmul.f32 %v845, %v184
        %v850 = vmul.f32 %v846, %v185
        %v851 = vmul.f32 %v847, %v186
        %v852 = vmul.f32 %v812, %v848
        %v853 = vmul.f32 %v813, %v849
        %v854 = vmul.f32 %v814, %v850
        %v855 = vmul.f32 %v815, %v851
        %860 = vrot.lane.b32.xlu0 %v852, 3
        %v861 = vpop.permute.xlu0 %860
        %862 = vrot.lane.b32.xlu0 %v853, 3
        %v863 = vpop.permute.xlu0 %862
        %864 = vrot.lane.b32.xlu0 %v854, 3
        %v865 = vpop.permute.xlu0 %864
        %866 = vrot.lane.b32.xlu0 %v855, 3
        %v867 = vpop.permute.xlu0 %866
        %v872 = vsub.f32 %v183, %v861
        %v873 = vsub.f32 %v184, %v863
        %v874 = vsub.f32 %v185, %v865
        %v875 = vsub.f32 %v186, %v867
        %877 = vset.pattern.permute.xlu0 5
        %878 = vperm.xlu0 %877, %v848
        %v879 = vpop.permute.xlu0 %878
        %882 = vset.pattern.permute.xlu0 5
        %883 = vperm.xlu0 %882, %v849
        %v884 = vpop.permute.xlu0 %883
        %887 = vset.pattern.permute.xlu0 5
        %888 = vperm.xlu0 %887, %v850
        %v889 = vpop.permute.xlu0 %888
        %892 = vset.pattern.permute.xlu0 5
        %893 = vperm.xlu0 %892, %v851
        %v894 = vpop.permute.xlu0 %893
        %v896 = vmul.f32 %v800, %v879
        %v897 = vmul.f32 %v801, %v884
        %v898 = vmul.f32 %v802, %v889
        %v899 = vmul.f32 %v803, %v894
        %901 = vset.pattern.permute.xlu0 8
        %902 = vperm.xlu0 %901, %v872
        %v903 = vpop.permute.xlu0 %902
        %906 = vset.pattern.permute.xlu0 8
        %907 = vperm.xlu0 %906, %v873
        %v908 = vpop.permute.xlu0 %907
        %911 = vset.pattern.permute.xlu0 8
        %912 = vperm.xlu0 %911, %v874
        %v913 = vpop.permute.xlu0 %912
        %916 = vset.pattern.permute.xlu0 8
        %917 = vperm.xlu0 %916, %v875
        %v918 = vpop.permute.xlu0 %917
        %v920 = vadd.f32 %v896, %v903
        %v921 = vadd.f32 %v897, %v908
        %v922 = vadd.f32 %v898, %v913
        %v923 = vadd.f32 %v899, %v918
        %v924 = vadd.f32 %v920, %v677
        %v925 = vadd.f32 %v921, %v678
        %v926 = vadd.f32 %v922, %v679
        %v927 = vadd.f32 %v923, %v680
        %v928 = vld [vmem:[%s182] sm:$0x1]
        %929 = vset.pattern.permute.xlu0 9
        %930 = vperm.xlu0 %929, %v183
        %v931 = vpop.permute.xlu0 %930
        %933 = vset.pattern.permute.xlu0 9
        %934 = vperm.xlu0 %933, %v184
        %v935 = vpop.permute.xlu0 %934
        %937 = vset.pattern.permute.xlu0 9
        %938 = vperm.xlu0 %937, %v185
        %v939 = vpop.permute.xlu0 %938
        %941 = vset.pattern.permute.xlu0 9
        %942 = vperm.xlu0 %941, %v186
        %v943 = vpop.permute.xlu0 %942
        %v945 = vmul.f32 %v924, %v931
        %v946 = vmul.f32 %v925, %v935
        %v947 = vmul.f32 %v926, %v939
        %v948 = vmul.f32 %v927, %v943
        %v949 = vadd.f32 %v945, %v946
        %v950 = vadd.f32 %v949, %v947
        %v951 = vadd.f32 %v950, %v948
        %v952 = vrot.slane %v951, 4
        %v953 = vadd.f32 %v951, %v952
        %v954 = vrot.slane %v953, 2
        %v955 = vadd.f32 %v953, %v954
        %v956 = vrot.slane %v955, 1
        %v957 = vadd.f32 %v955, %v956
        %959 = vset.pattern.permute.xlu0 10
        %960 = vperm.xlu0 %959, %v928
        %v961 = vpop.permute.xlu0 %960
        %v963 = vadd.f32 %v957, %v961
        %964 = vst [vmem:[%s174] sm:$0x1] %v963
        %s965 = sand.u32 %s110, 1
        %s966 = scalar_lea.sflag [#allocation3], %s965
        %s967 = sand.u32 %s110, 1
        %s968 = scalar_lea.vmem [#allocation2], %s967
        // Predicated region
        $region37: #{tpu_custom_call.1} parent=35 // pred_check
          %p969 = pneg %p120
        $region38: #{tpu_custom_call.1} parent=35 // pred_check_branch
          %971 = sbr.rel (%p969) target = $region40
        $region39: #{tpu_custom_call.1} parent=35 // pred_region
          %s973 = ssub.s32 16, 16
          %974 = vsyncadd %s966, %s973
          %s975 = smul.addr %s18, 16
          %s976 = scalar_lea.hbm %s4, %s975
          %s978 = sshll.u32 %s968, 4
          %s979 = int_to_ptr.vmem [resolvable:$true] %s978
          %981 = dma.vmem_to_hbm [thread:$0]  %s979, 16, %s976, %s966
        $region40: #{tpu_custom_call.1} parent=35 // pred_fallthru
          _
      $region36: #{tpu_custom_call.1} parent=5 // pred_fallthru
        _
      %p982 = scmp.le.s32.totalorder 2, %s13
      // Predicated region
      $region41: #{tpu_custom_call.1} parent=5 // pred_check
        %p983 = pneg %p982
      $region42: #{tpu_custom_call.1} parent=5 // pred_check_branch
        %985 = sbr.rel (%p983) target = $region44
      $region43: #{tpu_custom_call.1} parent=5 // pred_region
        %s986 = ssub.s32 %s13, 2
        // Predicated region
        $region45: #{tpu_custom_call.1} parent=43 // pred_check
          %p987 = pneg %p126
        $region46: #{tpu_custom_call.1} parent=43 // pred_check_branch
          %989 = sbr.rel (%p987) target = $region48
        $region47: #{tpu_custom_call.1} parent=43 // pred_region
          %s990 = sand.u32 %s111, 1
          %s991 = scalar_lea.sflag [#allocation3], %s990
          %s992 = sand.u32 %s111, 1
          %s993 = scalar_lea.vmem [#allocation2], %s992
          %994 = dma.done %s991, 16
        $region48: #{tpu_custom_call.1} parent=43 // pred_fallthru
          _
      $region44: #{tpu_custom_call.1} parent=5 // pred_fallthru
        _
    $region6: #{tpu_custom_call.1} parent=1 // loop_footer
      %s17 = sadd.s32 1, %s13
    $region7: #{tpu_custom_call.1} parent=1 // loop_footer_branch
      %12 = sbr.rel target = $region3
    $region8: #{tpu_custom_call.1} parent=1 // loop_exit
      _
    %995 = vsyncpa [#allocation3], 1
    %s996 = scalar_lea.sflag [#allocation3], 1
    %997 = vsyncpa %s996, 1

</llo_original>
